<compile_context>
chip_gen: v6e
topology: v6e:2x2x1
jax: 0.10.0
libtpu: 0.0.40
codegen_flags: <defaults>
</compile_context>

<pallas_src>
import functools

import jax
import jax.numpy as jnp
from jax.experimental import pallas as pl
from jax.experimental.pallas import tpu as pltpu

_LANES = 128
_SUBLANES = 8
_MAX_TILE_R = 4096  # 2 MiB per f32 input block; 8 MiB double-buffered for 2 inputs.


def _huber_sum_kernel(o_ref, t_ref, out_ref, *, beta, rows, steps, tile_r):
    c = pl.program_id(0)  # shard (megacore) axis
    i = pl.program_id(1)  # streaming / reduction axis

    @pl.when(i == 0)
    def _():
        out_ref[...] = jnp.zeros_like(out_ref)

    diff = o_ref[...].astype(jnp.float32) - t_ref[...].astype(jnp.float32)
    ad = jnp.abs(diff)

    # Row-validity mask for the ragged last block of each shard and for fully
    # out-of-range (clamped) invocations.  Garbage rows (stale VMEM) are zeroed
    # *before* the fold so they contribute nothing.
    row0 = (c * steps + i) * tile_r  # UN-clamped global row offset of this block
    local = jax.lax.broadcasted_iota(jnp.int32, (tile_r, 1), 0)
    ad = jnp.where(row0 + local < rows, ad, 0.0)

    # beta * smooth_l1((o-t)/beta) == (0.5/beta) * clip * (2*|d| - clip),
    #   clip = min(|d|, beta).
    # The 0.5/beta constant is applied once in the wrapper, keeping the hot
    # loop to sub/abs/select/min/add/sub/mul/add per vreg.
    clip = jnp.minimum(ad, jnp.float32(beta))
    elem = clip * (ad + ad - clip)

    # Sublane fold: (tile_r, 128) -> (tile_r//8, 8, 128) summed over axis 0 is
    # pure vreg-wise VPU adds (no per-step cross-lane XLU work).
    partial = jnp.sum(elem.reshape(-1, _SUBLANES, _LANES), axis=0, keepdims=True)
    out_ref[...] += partial


def _round_up(x, m):
    return (x + m - 1) // m * m


def _num_tensorcores():
    # v4 / v5p / v7x expose 2 TensorCores per device ("megacore"); v5e / v6e 1.
    try:
        kind = jax.devices()[0].device_kind.lower()
    except Exception:  # pragma: no cover - defensive
        return 1
    return 2 if any(tag in kind for tag in ("v4", "v5p", "7")) else 1


def huber_loss(outputs, targets, beta=0.1, reduction="mean"):
    assert outputs.shape == targets.shape
    assert beta > 0.0, "HuberLoss requires beta > 0 (the module divides by beta)"
    if reduction not in ("mean", "sum"):
        # TODO(synk): reduction='none' (elementwise output) not implemented.
        raise NotImplementedError("only reduction in ('mean', 'sum') supported")

    total_n = outputs.size
    itemsize = jnp.dtype(outputs.dtype).itemsize
    # Sublane packing: 8 rows for 32-bit, 16 for 16-bit, 32 for 8-bit dtypes.
    sub_mult = max(_SUBLANES, (4 // max(itemsize, 1)) * _SUBLANES)

    o_flat = outputs.reshape(-1)
    t_flat = targets.reshape(-1)

    tail = total_n % _LANES
    if tail != 0:
        # Rare fallback: non-lane-aligned element count.  Zero-pad BOTH inputs
        # to the next 128-element boundary (identical zero padding -> diff == 0
        # -> contributes nothing).  In the common lane-aligned case there is no
        # padding copy at all: the reshape below is a free view and the ragged
        # last *block* is masked inside the kernel.
        pad = _LANES - tail
        o_flat = jnp.pad(o_flat, (0, pad))
        t_flat = jnp.pad(t_flat, (0, pad))
    rows = o_flat.size // _LANES
    o2 = o_flat.reshape(rows, _LANES)
    t2 = t_flat.reshape(rows, _LANES)

    # Row tile: as large as comfortably fits double-buffered VMEM on all
    # generations (8 MiB of input buffers at tile_r=4096 vs 16 MiB default
    # scoped VMEM on v5e, 32 MiB on v6e/v7x).  Small/medium inputs collapse to
    # a single block / single grid step with minimal round-up.
    tile_r = min(_MAX_TILE_R, _round_up(rows, sub_mult))
    blocks_total = pl.cdiv(rows, tile_r)

    # Leading "parallel" shard axis so megacore parts can split the
    # bandwidth-bound scan across TensorCores; single-TC parts keep one
    # contiguous streaming scan.
    n_shards = min(_num_tensorcores(), blocks_total)
    steps = pl.cdiv(blocks_total, n_shards)

    def idx_map(c, i):
        # Clamp invocations that fall past the last block (they are fully
        # masked inside the kernel) so the DMA never walks out of bounds.
        b = jnp.minimum(c * steps + i, blocks_total - 1)
        return (b, 0)

    in_spec = pl.BlockSpec((tile_r, _LANES), idx_map)
    kernel = functools.partial(
        _huber_sum_kernel, beta=float(beta), rows=rows, steps=steps, tile_r=tile_r
    )

    cost = pl.CostEstimate(
        flops=8 * total_n,
        transcendentals=0,
        bytes_accessed=2 * rows * _LANES * itemsize
        + n_shards * _SUBLANES * _LANES * 4,
    )

    partials = pl.pallas_call(
        kernel,
        out_shape=jax.ShapeDtypeStruct((n_shards, _SUBLANES, _LANES), jnp.float32),
        grid_spec=pltpu.PrefetchScalarGridSpec(
            num_scalar_prefetch=0,
            grid=(n_shards, steps),
            in_specs=[in_spec, in_spec],
            out_specs=pl.BlockSpec((1, _SUBLANES, _LANES), lambda c, i: (c, 0, 0)),
        ),
        compiler_params=pltpu.CompilerParams(
            dimension_semantics=("parallel", "arbitrary"),
        ),
        cost_estimate=cost,
    )(o2, t2)

    # <= 2048 lane partials: final cross-lane reduce + (0.5/beta) scale in
    # plain JAX (free relative to the streaming scan).
    total = jnp.sum(partials) * jnp.float32(0.5 / float(beta))
    if reduction == "mean":
        return total / jnp.float32(total_n)
    return total


def huber_loss_ref(outputs, targets, beta=0.1, reduction="mean"):
    d = (outputs.astype(jnp.float32) - targets.astype(jnp.float32)) / beta
    ad = jnp.abs(d)
    elem = jnp.where(ad < 1.0, 0.5 * d * d, ad - 0.5)
    red = jnp.mean(elem) if reduction == "mean" else jnp.sum(elem)
    return red * beta


if __name__ == "__main__":
    key = jax.random.PRNGKey(0)
    k1, k2 = jax.random.split(key)

    # NCHW example consistent with typical usage of the module.
    x = jax.random.normal(k1, (2, 4, 16, 16), dtype=jnp.float32)
    y = jax.random.normal(k2, (2, 4, 16, 16), dtype=jnp.float32)
    loss = jax.block_until_ready(huber_loss(x, y, beta=0.1, reduction="mean"))
    ref = huber_loss_ref(x, y, beta=0.1)
    assert jnp.allclose(loss, ref, rtol=1e-4, atol=1e-6), (loss, ref)

    loss_s = jax.block_until_ready(huber_loss(x, y, beta=0.1, reduction="sum"))
    ref_s = huber_loss_ref(x, y, beta=0.1, reduction="sum")
    assert jnp.allclose(loss_s, ref_s, rtol=1e-4, atol=1e-4), (loss_s, ref_s)

    # Non-128-divisible element count: exercises the minimal tail-padding path
    # and a single ragged (rows not multiple of 8) block.
    k3, k4 = jax.random.split(k2)
    x2 = jax.random.normal(k3, (3, 5, 33, 17), dtype=jnp.float32)
    y2 = jax.random.normal(k4, (3, 5, 33, 17), dtype=jnp.float32)
    loss2 = jax.block_until_ready(huber_loss(x2, y2, beta=0.1))
    ref2 = huber_loss_ref(x2, y2, beta=0.1)
    assert jnp.allclose(loss2, ref2, rtol=1e-4, atol=1e-6), (loss2, ref2)

    # Medium shape: lane-aligned, single block, no padding copy.
    k5, k6 = jax.random.split(k4)
    x3 = jax.random.normal(k5, (4, 8, 64, 65), dtype=jnp.float32)
    y3 = jax.random.normal(k6, (4, 8, 64, 65), dtype=jnp.float32)
    loss3 = jax.block_until_ready(huber_loss(x3, y3, beta=0.1))
    ref3 = huber_loss_ref(x3, y3, beta=0.1)
    assert jnp.allclose(loss3, ref3, rtol=1e-4, atol=1e-6), (loss3, ref3)

    # Larger shape: multi-block grid with a ragged, masked last block (and a
    # clamped fully-masked invocation on 2-TensorCore parts); no padding copy.
    k7, k8 = jax.random.split(k6)
    x4 = jax.random.normal(k7, (2, 4, 512, 260), dtype=jnp.float32)
    y4 = jax.random.normal(k8, (2, 4, 512, 260), dtype=jnp.float32)
    loss4 = jax.block_until_ready(huber_loss(x4, y4, beta=0.1))
    ref4 = huber_loss_ref(x4, y4, beta=0.1)
    assert jnp.allclose(loss4, ref4, rtol=1e-4, atol=1e-5), (loss4, ref4)

    print("KERNEL_OK")
</pallas_src>

<mosaic_0001>
module attributes {stable_mosaic.version = 11 : i64} {
  func.func @_huber_sum_kernel(%arg0: i32, %arg1: i32, %arg2: memref<16x128xf32, #tpu.memory_space<vmem>>, %arg3: memref<16x128xf32, #tpu.memory_space<vmem>>, %arg4: memref<1x8x128xf32, #tpu.memory_space<vmem>>) attributes {dimension_semantics = [#tpu.dimension_semantics<parallel>, #tpu.dimension_semantics<arbitrary>], iteration_bounds = array<i64: 1, 1>, scalar_prefetch = 0 : i64, scratch_operands = 0 : i64, tpu.core_type = #tpu.core_type<tc>, window_params = [{transform_indices = @transform_0, window_bounds = array<i64: 16, 128>}, {transform_indices = @transform_1, window_bounds = array<i64: 16, 128>}, {transform_indices = @transform_2, window_bounds = array<i64: 1, 8, 128>}]} {
    %c0_i32 = arith.constant 0 : i32
    %0 = arith.cmpi eq, %arg1, %c0_i32 : i32
    %1 = arith.extui %0 : i1 to i32
    %c0_i32_0 = arith.constant 0 : i32
    %2 = arith.cmpi ne, %1, %c0_i32_0 : i32
    scf.if %2 {
      %cst_13 = arith.constant 0.000000e+00 : f32
      %30 = vector.broadcast %cst_13 : f32 to vector<1x8x128xf32>
      %c0_14 = arith.constant 0 : index
      %c0_15 = arith.constant 0 : index
      %c0_16 = arith.constant 0 : index
      %31 = vector.load %arg4[%c0_14, %c0_15, %c0_16] : memref<1x8x128xf32, #tpu.memory_space<vmem>>, vector<1x8x128xf32>
      tpu.vector_store %arg4[%c0_14, %c0_15, %c0_16], %30 {strides = array<i32>} : memref<1x8x128xf32, #tpu.memory_space<vmem>>, vector<1x8x128xf32>,
    } else {
    }
    %c0 = arith.constant 0 : index
    %c0_1 = arith.constant 0 : index
    %3 = vector.load %arg2[%c0, %c0_1] : memref<16x128xf32, #tpu.memory_space<vmem>>, vector<16x128xf32>
    %c0_2 = arith.constant 0 : index
    %c0_3 = arith.constant 0 : index
    %4 = vector.load %arg3[%c0_2, %c0_3] : memref<16x128xf32, #tpu.memory_space<vmem>>, vector<16x128xf32>
    %5 = arith.subf %3, %4 : vector<16x128xf32>
    %6 = math.absf %5 : vector<16x128xf32>
    %c1_i32 = arith.constant 1 : i32
    %7 = arith.muli %arg0, %c1_i32 : i32
    %8 = arith.addi %7, %arg1 : i32
    %c16_i32 = arith.constant 16 : i32
    %9 = arith.muli %8, %c16_i32 : i32
    %10 = tpu.iota {dimensions = array<i32: 0>} : vector<16x1xi32>
    %11 = vector.broadcast %9 : i32 to vector<16x1xi32>
    %12 = arith.addi %11, %10 : vector<16x1xi32>
    %c16_i32_4 = arith.constant 16 : i32
    %13 = vector.broadcast %c16_i32_4 : i32 to vector<16x1xi32>
    %14 = arith.cmpi slt, %12, %13 : vector<16x1xi32>
    %cst = arith.constant 0.000000e+00 : f32
    %15 = vector.shape_cast %14 : vector<16x1xi1> to vector<16x1xi1>
    %16 = vector.broadcast %15 : vector<16x1xi1> to vector<16x128xi1>
    %17 = vector.broadcast %cst : f32 to vector<16x128xf32>
    %18 = arith.select %16, %6, %17 : vector<16x128xi1>, vector<16x128xf32>
    %cst_5 = arith.constant 1.000000e-01 : f32
    %19 = vector.broadcast %cst_5 : f32 to vector<16x128xf32>
    %20 = arith.minimumf %18, %19 : vector<16x128xf32>
    %21 = arith.addf %18, %18 : vector<16x128xf32>
    %22 = arith.subf %21, %20 : vector<16x128xf32>
    %23 = arith.mulf %20, %22 : vector<16x128xf32>
    %24 = vector.shape_cast %23 : vector<16x128xf32> to vector<2x8x128xf32>
    %cst_6 = arith.constant dense<0.000000e+00> : vector<8x128xf32>
    %25 = vector.multi_reduction <add>, %24, %cst_6 [0] : vector<2x8x128xf32> to vector<8x128xf32>
    %26 = vector.shape_cast %25 : vector<8x128xf32> to vector<1x8x128xf32>
    %c0_7 = arith.constant 0 : index
    %c0_8 = arith.constant 0 : index
    %c0_9 = arith.constant 0 : index
    %27 = vector.load %arg4[%c0_7, %c0_8, %c0_9] : memref<1x8x128xf32, #tpu.memory_space<vmem>>, vector<1x8x128xf32>
    %28 = arith.addf %27, %26 : vector<1x8x128xf32>
    %c0_10 = arith.constant 0 : index
    %c0_11 = arith.constant 0 : index
    %c0_12 = arith.constant 0 : index
    %29 = vector.load %arg4[%c0_10, %c0_11, %c0_12] : memref<1x8x128xf32, #tpu.memory_space<vmem>>, vector<1x8x128xf32>
    tpu.vector_store %arg4[%c0_10, %c0_11, %c0_12], %28 {strides = array<i32>} : memref<1x8x128xf32, #tpu.memory_space<vmem>>, vector<1x8x128xf32>,
    return
  }
  func.func @transform_0(%arg0: i32, %arg1: i32) -> (i32, i32) {
    %c1_i32 = arith.constant 1 : i32
    %0 = arith.muli %arg0, %c1_i32 : i32
    %1 = arith.addi %0, %arg1 : i32
    %c0_i32 = arith.constant 0 : i32
    %2 = arith.minsi %1, %c0_i32 : i32
    %c0_i32_0 = arith.constant 0 : i32
    %c0_i32_1 = arith.constant 0 : i32
    return %2, %c0_i32_0 : i32, i32
  }
  func.func @transform_1(%arg0: i32, %arg1: i32) -> (i32, i32) {
    %c1_i32 = arith.constant 1 : i32
    %0 = arith.muli %arg0, %c1_i32 : i32
    %1 = arith.addi %0, %arg1 : i32
    %c0_i32 = arith.constant 0 : i32
    %2 = arith.minsi %1, %c0_i32 : i32
    %c0_i32_0 = arith.constant 0 : i32
    %c0_i32_1 = arith.constant 0 : i32
    return %2, %c0_i32_0 : i32, i32
  }
  func.func @transform_2(%arg0: i32, %arg1: i32) -> (i32, i32, i32) {
    %c0_i32 = arith.constant 0 : i32
    %c0_i32_0 = arith.constant 0 : i32
    %c0_i32_1 = arith.constant 0 : i32
    return %arg0, %c0_i32, %c0_i32_0 : i32, i32, i32
  }
}

</mosaic_0001>

<llo_original>
// kernel: tpu_custom_call.1
$region0: #{tpu_custom_call.1}
  #allocation0 [shape = 'u32[]', space=smem, size = 0x4, offset = 0x4, fixed_abs, tag = 'smem constant byte address 0x4 - core index']
  #allocation1 [shape = 'u32[144,128]{1,0:T(1,128)}', space=vmem, size = 0x12000, scoped, tag = 'internal scratch']
  %s0 = inlined_call_operand.hbm [shape: f32[16,128], index: 0, kind: input, shape index: {}]
  %s1 = inlined_call_operand.hbm [shape: f32[16,128], index: 1, kind: input, shape index: {}]
  %s2 = inlined_call_operand.hbm [shape: f32[1,8,128], index: 2, kind: output, shape index: {}]
  %s3 = sld [smem:[#allocation0]]
  $region30: #{tpu_custom_call.1} parent=0
    _
  %s5 = ssub.s32 1, %s3
  %s6 = scalar_select 0, %s5, %s3
  $region1: #{tpu_custom_call.1} parent=0
    #allocation2 [shape = 'u8[8192]{0}', space=vmem, size = 0x2000, scoped, tag = 'input window, operand 0, single buffered']
    #allocation3 [shape = 's32[1]{0}', space=sflag, size = 0x4, scoped, tag = 'scoped memory for tpu_custom_call.1']
    #allocation4 [shape = 's32[1]{0}', space=sflag, size = 0x4, scoped, tag = 'scoped memory for tpu_custom_call.1']
    #allocation5 [shape = 'u8[8192]{0}', space=vmem, size = 0x2000, scoped, tag = 'input window, operand 1, single buffered']
    #allocation6 [shape = 's32[1]{0}', space=sflag, size = 0x4, scoped, tag = 'scoped memory for tpu_custom_call.1']
    #allocation7 [shape = 'u8[4096]{0}', space=vmem, size = 0x1000, scoped, tag = 'output window, operand 0, single buffered']
    %7 = vsyncpa [#allocation3], 0
    %8 = vsyncpa [#allocation6], 0
    %9 = vsyncpa [#allocation4], 0
    // Predicated region
    $region2: #{tpu_custom_call.1} parent=1 // pred_check
      _
    $region3: #{tpu_custom_call.1} parent=1 // pred_check_branch
      %11 = sbr.rel (0) target = $region5
    $region4: #{tpu_custom_call.1} parent=1 // pred_region
      %s12 = sadd.s32 0, 0
      %p13 = scmp.lt.s32.totalorder %s12, 0
      %s14 = scalar_select %p13, %s12, 0
      %s15 = smul.u32 2, %s14
      %s17 = ssub.s32 256, 256
      %18 = vsyncadd [#allocation3], %s17
      %s19 = smul.addr %s15, 128
      %s20 = scalar_lea.hbm %s0, %s19
      %s21 = sshll.u32 [#allocation2], 4
      %s22 = int_to_ptr.vmem [resolvable:$true] %s21
      %27 = dma.hbm_to_vmem [thread:$0]  %s20, 256, %s22, [#allocation3], 128, 128, 8
    $region5: #{tpu_custom_call.1} parent=1 // pred_fallthru
      _
    // Predicated region
    $region6: #{tpu_custom_call.1} parent=1 // pred_check
      _
    $region7: #{tpu_custom_call.1} parent=1 // pred_check_branch
      %29 = sbr.rel (0) target = $region9
    $region8: #{tpu_custom_call.1} parent=1 // pred_region
      %s30 = sadd.s32 0, 0
      %p31 = scmp.lt.s32.totalorder %s30, 0
      %s32 = scalar_select %p31, %s30, 0
      %s33 = smul.u32 2, %s32
      %s35 = ssub.s32 256, 256
      %36 = vsyncadd [#allocation6], %s35
      %s37 = smul.addr %s33, 128
      %s38 = scalar_lea.hbm %s1, %s37
      %s39 = sshll.u32 [#allocation5], 4
      %s40 = int_to_ptr.vmem [resolvable:$true] %s39
      %45 = dma.hbm_to_vmem [thread:$0]  %s38, 256, %s40, [#allocation6], 128, 128, 8
    $region9: #{tpu_custom_call.1} parent=1 // pred_fallthru
      _
    // Predicated region
    $region10: #{tpu_custom_call.1} parent=1 // pred_check
      _
    $region11: #{tpu_custom_call.1} parent=1 // pred_check_branch
      %47 = sbr.rel (0) target = $region13
    $region12: #{tpu_custom_call.1} parent=1 // pred_region
      %48 = dma.done [#allocation3], 256
    $region13: #{tpu_custom_call.1} parent=1 // pred_fallthru
      _
    // Predicated region
    $region14: #{tpu_custom_call.1} parent=1 // pred_check
      _
    $region15: #{tpu_custom_call.1} parent=1 // pred_check_branch
      %50 = sbr.rel (0) target = $region17
    $region16: #{tpu_custom_call.1} parent=1 // pred_region
      %51 = dma.done [#allocation6], 256
    $region17: #{tpu_custom_call.1} parent=1 // pred_fallthru
      _
    %s52 = sadd.s32 0, 0
    %p53 = scmp.lt.s32.totalorder %s52, 0
    %s54 = scalar_select %p53, %s52, 0
    %s55 = smul.u32 2, %s54
    %s56 = sadd.s32 0, 0
    %p57 = scmp.lt.s32.totalorder %s56, 0
    %s58 = scalar_select %p57, %s56, 0
    %s59 = smul.u32 2, %s58
    %p60 = scmp.eq.s32.totalorder 0, 0
    // Predicated region
    $region18: #{tpu_custom_call.1} parent=1 // pred_check
      %p61 = pneg %p60
    $region19: #{tpu_custom_call.1} parent=1 // pred_check_branch
      %63 = sbr.rel (%p61) target = $region21
    $region20: #{tpu_custom_call.1} parent=1 // pred_region
      %64 = vst [vmem:[#allocation7] sm:$0xff] 0.0
    $region21: #{tpu_custom_call.1} parent=1 // pred_fallthru
      _
    %v65 = vld [vmem:[#allocation2] sm:$0xff]
    %v66 = vld [vmem:[#allocation2 + $0x8] sm:$0xff]
    %v67 = vld [vmem:[#allocation5] sm:$0xff]
    %v68 = vld [vmem:[#allocation5 + $0x8] sm:$0xff]
    %v69 = vsub.f32 %v65, %v67
    %v70 = vsub.f32 %v66, %v68
    %v71 = vand.u32 2147483647, %v69
    %v72 = vand.u32 2147483647, %v70
    %s73 = sadd.s32 0, 0
    %s74 = smul.u32 %s73, 16
    %v75 = vlaneseq
    %v76 = vshrl.u32 %v75, 7
    %v77 = vadd.s32 %v76, 8
    %v78 = vstv %s74
    %v79 = vadd.s32 %v78, %v76
    %v80 = vadd.s32 %v78, %v77
    %vm81 = vcmp.lt.s32.totalorder %v79, 16
    %vm82 = vcmp.lt.s32.totalorder %v80, 16
    %v83 = vsel %vm81, 1, 0
    %v84 = vsel %vm82, 1, 0
    %vm85 = vcmp.eq.s32.totalorder %v83, 1
    %vm86 = vcmp.eq.s32.totalorder %v84, 1
    %v87 = vsel %vm85, %v71, 0.0
    %v88 = vsel %vm86, %v72, 0.0
    %v89 = vmin.f32 %v87, 0.1
    %v90 = vmin.f32 %v88, 0.1
    %v91 = vadd.f32 %v87, %v87
    %v92 = vadd.f32 %v88, %v88
    %v93 = vsub.f32 %v91, %v89
    %v94 = vsub.f32 %v92, %v90
    %v95 = vmul.f32 %v89, %v93
    %v96 = vmul.f32 %v90, %v94
    %v97 = vadd.f32 %v95, %v96
    %v98 = vld [vmem:[#allocation7] sm:$0xff]
    %v99 = vadd.f32 %v98, %v97
    %100 = vst [vmem:[#allocation7] sm:$0xff] %v99
    // Predicated region
    $region22: #{tpu_custom_call.1} parent=1 // pred_check
      _
    $region23: #{tpu_custom_call.1} parent=1 // pred_check_branch
      %102 = sbr.rel (0) target = $region25
    $region24: #{tpu_custom_call.1} parent=1 // pred_region
      %s104 = ssub.s32 128, 128
      %105 = vsyncadd [#allocation4], %s104
      %s107 = sshll.u32 [#allocation7], 4
      %s108 = int_to_ptr.vmem [resolvable:$true] %s107
      %110 = dma.vmem_to_hbm [thread:$0]  %s108, 128, %s2, [#allocation4]
    $region25: #{tpu_custom_call.1} parent=1 // pred_fallthru
      _
    // Predicated region
    $region26: #{tpu_custom_call.1} parent=1 // pred_check
      _
    $region27: #{tpu_custom_call.1} parent=1 // pred_check_branch
      %112 = sbr.rel (0) target = $region29
    $region28: #{tpu_custom_call.1} parent=1 // pred_region
      %113 = dma.done [#allocation4], 128
    $region29: #{tpu_custom_call.1} parent=1 // pred_fallthru
      _
    %114 = vsyncpa [#allocation3], 1
    %115 = vsyncpa [#allocation6], 1
    %116 = vsyncpa [#allocation4], 1

</llo_original>
